<compile_context>
chip_gen: v5e
topology: v5e:2x2
jax: 0.10.0
libtpu: 0.0.40
codegen_flags: <defaults>
</compile_context>

<pallas_src>
import jax
import jax.numpy as jnp
from jax.experimental import pallas as pl
from jax.experimental.pallas import tpu as pltpu


def _patch_matmul_kernel(p_ref, w_ref, b_ref, o_ref):
    """o = p @ w + b for one tile of patch rows.

    p_ref: (tm, K)   im2col'd pixels of tm patches
    w_ref: (K, Ep)   flattened conv weight (resident across the grid)
    b_ref: (1, Ep)   conv bias
    o_ref: (tm, Ep)  embedded patches
    """
    acc = jnp.dot(p_ref[...], w_ref[...], preferred_element_type=jnp.float32)
    o_ref[...] = (acc + b_ref[...].astype(jnp.float32)).astype(o_ref.dtype)


def patch_embed(x, weight, bias, *, patch_size, tile_m=256, mxu_dtype=None):
    """PatchEmbed forward.

    x:      (B, C, H, W)
    weight: (E, C, ph, pw)   -- PyTorch Conv2d weight layout (OIHW)
    bias:   (E,)
    returns (B, num_patches, E) with num_patches = (H//ph)*(W//pw), patches
    ordered row-major over the (H//ph, W//pw) grid, i.e. exactly
    `proj(x).flatten(2).transpose(1, 2)`.
    """
    B, C, H, W = x.shape
    ph, pw = patch_size
    assert H % ph == 0 and W % pw == 0, "image size must match patch grid"
    Hp, Wp = H // ph, W // pw
    num_patches = Hp * Wp
    E = weight.shape[0]
    K = C * ph * pw

    # ---- im2col: pure layout, done by XLA in the wrapper --------------------
    # (B, C, Hp, ph, Wp, pw) -> (B, Hp, Wp, C, ph, pw) -> (B*P, C*ph*pw)
    patches = x.reshape(B, C, Hp, ph, Wp, pw)
    patches = patches.transpose(0, 2, 4, 1, 3, 5).reshape(B * num_patches, K)
    w2d = weight.reshape(E, K).T                       # (K, E): kernel does p @ W
    b2d = bias.reshape(1, E)

    if mxu_dtype is not None:                          # e.g. jnp.bfloat16 on v6e/v7x
        patches = patches.astype(mxu_dtype)
        w2d = w2d.astype(mxu_dtype)

    # ---- lane-dense output: pad embed dim up to a multiple of 128 -----------
    e_pad = (-E) % 128
    if e_pad:
        w2d = jnp.pad(w2d, ((0, 0), (0, e_pad)))
        b2d = jnp.pad(b2d, ((0, 0), (0, e_pad)))
    Ep = E + e_pad

    # ---- tile the patch-row (M) axis so each MXU call sees tile_m rows ------
    M = B * num_patches
    tm = min(tile_m, M)
    m_pad = (-M) % tm
    if m_pad:
        patches = jnp.pad(patches, ((0, m_pad), (0, 0)))
    Mp = M + m_pad
    grid = (Mp // tm,)

    out = pl.pallas_call(
        _patch_matmul_kernel,
        out_shape=jax.ShapeDtypeStruct((Mp, Ep), x.dtype),
        grid=grid,
        in_specs=[
            pl.BlockSpec((tm, K), lambda i: (i, 0)),   # patch rows (pipelined)
            pl.BlockSpec((K, Ep), lambda i: (0, 0)),   # weight (constant index map)
            pl.BlockSpec((1, Ep), lambda i: (0, 0)),   # bias
        ],
        out_specs=pl.BlockSpec((tm, Ep), lambda i: (i, 0)),
        compiler_params=pltpu.CompilerParams(
            dimension_semantics=("parallel",),
            vmem_limit_bytes=64 << 20),
    )(patches, w2d, b2d)

    return out[:M, :E].reshape(B, num_patches, E)


def reference_patch_embed(x, weight, bias, patch_size):
    """Pure-JAX reference mirroring the PyTorch forward exactly."""
    y = jax.lax.conv_general_dilated(
        x, weight, window_strides=patch_size, padding="VALID",
        dimension_numbers=("NCHW", "OIHW", "NCHW"))
    y = y + bias.reshape(1, -1, 1, 1)
    B, E, Hp, Wp = y.shape
    return y.reshape(B, E, Hp * Wp).transpose(0, 2, 1)


if __name__ == "__main__":
    # Small shapes consistent with the module (scaled-down ViT patch embed):
    # B=2, in_chans=3, img=16x16, patch=4x4 -> 16 patches, embed_dim=32.
    B, C, H, W = 2, 3, 16, 16
    ph = pw = 4
    E = 32

    key = jax.random.PRNGKey(0)
    kx, kw, kb = jax.random.split(key, 3)
    x = jax.random.normal(kx, (B, C, H, W), jnp.float32)
    weight = 0.05 * jax.random.normal(kw, (E, C, ph, pw), jnp.float32)
    bias = 0.05 * jax.random.normal(kb, (E,), jnp.float32)

    y = jax.block_until_ready(patch_embed(x, weight, bias, patch_size=(ph, pw)))

    y_ref = reference_patch_embed(x, weight, bias, (ph, pw))
    assert y.shape == (B, (H // ph) * (W // pw), E)
    assert jnp.allclose(y, y_ref, atol=1e-4, rtol=1e-4), "mismatch vs reference"

    print("KERNEL_OK")
</pallas_src>

<mosaic_0001>
module attributes {stable_mosaic.version = 11 : i64} {
  func.func @_patch_matmul_kernel(%arg0: i32, %arg1: memref<32x48xf32, #tpu.memory_space<vmem>>, %arg2: memref<48x128xf32, #tpu.memory_space<vmem>>, %arg3: memref<1x128xf32, #tpu.memory_space<vmem>>, %arg4: memref<32x128xf32, #tpu.memory_space<vmem>>) attributes {dimension_semantics = [#tpu.dimension_semantics<parallel>], iteration_bounds = array<i64: 1>, scalar_prefetch = 0 : i64, scratch_operands = 0 : i64, tpu.core_type = #tpu.core_type<tc>, window_params = [{transform_indices = @transform_0, window_bounds = array<i64: 32, 48>}, {pipeline_mode = #tpu.pipeline_mode<synchronous>, transform_indices = @transform_1, window_bounds = array<i64: 48, 128>}, {pipeline_mode = #tpu.pipeline_mode<synchronous>, transform_indices = @transform_2, window_bounds = array<i64: 1, 128>}, {transform_indices = @transform_3, window_bounds = array<i64: 32, 128>}]} {
    %c0 = arith.constant 0 : index
    %c0_0 = arith.constant 0 : index
    %0 = vector.load %arg1[%c0, %c0_0] : memref<32x48xf32, #tpu.memory_space<vmem>>, vector<32x48xf32>
    %c0_1 = arith.constant 0 : index
    %c0_2 = arith.constant 0 : index
    %1 = vector.load %arg2[%c0_1, %c0_2] : memref<48x128xf32, #tpu.memory_space<vmem>>, vector<48x128xf32>
    %cst = arith.constant dense<0.000000e+00> : vector<32x128xf32>
    %2 = tpu.matmul %0, %1, %cst {dimension_numbers = #tpu.dot_dimension_numbers<[1], [0], [0], [1], [0, 0, 1, 1], [], []>} : vector<32x48xf32>, vector<48x128xf32>, vector<32x128xf32> -> vector<32x128xf32>
    %c0_3 = arith.constant 0 : index
    %c0_4 = arith.constant 0 : index
    %3 = vector.load %arg3[%c0_3, %c0_4] : memref<1x128xf32, #tpu.memory_space<vmem>>, vector<1x128xf32>
    %4 = vector.broadcast %3 : vector<1x128xf32> to vector<32x128xf32>
    %5 = arith.addf %2, %4 : vector<32x128xf32>
    %c0_5 = arith.constant 0 : index
    %c0_6 = arith.constant 0 : index
    %6 = vector.load %arg4[%c0_5, %c0_6] : memref<32x128xf32, #tpu.memory_space<vmem>>, vector<32x128xf32>
    tpu.vector_store %arg4[%c0_5, %c0_6], %5 {strides = array<i32>} : memref<32x128xf32, #tpu.memory_space<vmem>>, vector<32x128xf32>,
    return
  }
  func.func @transform_0(%arg0: i32) -> (i32, i32) {
    %c0_i32 = arith.constant 0 : i32
    %c0_i32_0 = arith.constant 0 : i32
    return %arg0, %c0_i32 : i32, i32
  }
  func.func @transform_1(%arg0: i32) -> (i32, i32) {
    %c0_i32 = arith.constant 0 : i32
    %c0_i32_0 = arith.constant 0 : i32
    %c0_i32_1 = arith.constant 0 : i32
    return %c0_i32, %c0_i32_0 : i32, i32
  }
  func.func @transform_2(%arg0: i32) -> (i32, i32) {
    %c0_i32 = arith.constant 0 : i32
    %c0_i32_0 = arith.constant 0 : i32
    %c0_i32_1 = arith.constant 0 : i32
    return %c0_i32, %c0_i32_0 : i32, i32
  }
  func.func @transform_3(%arg0: i32) -> (i32, i32) {
    %c0_i32 = arith.constant 0 : i32
    %c0_i32_0 = arith.constant 0 : i32
    return %arg0, %c0_i32 : i32, i32
  }
}

</mosaic_0001>

<llo_original>
// kernel: tpu_custom_call.1
$region0: #{tpu_custom_call.1}
  #allocation0 [shape = 'u32[]', space=smem, size = 0x4, offset = 0x4, fixed_abs, tag = 'smem constant byte address 0x4 - core index']
  #allocation1 [shape = 'u32[72,128]{1,0:T(1,128)}', space=vmem, size = 0x9000, scoped, tag = 'internal scratch']
  %s0 = inlined_call_operand.hbm [shape: f32[32,48], index: 0, kind: input, shape index: {}]
  %s1 = inlined_call_operand.hbm [shape: f32[48,128], index: 1, kind: input, shape index: {}]
  %s2 = inlined_call_operand.vmem [shape: f32[1,128], index: 2, kind: input, shape index: {}]
  %s3 = inlined_call_operand.hbm [shape: f32[32,128], index: 3, kind: output, shape index: {}]
  %s4 = sld [smem:[#allocation0]]
  $region30: #{tpu_custom_call.1} parent=0
    _
  %s6 = ssub.s32 1, %s4
  %s7 = scalar_select 0, %s6, %s4
  $region1: #{tpu_custom_call.1} parent=0
    #allocation2 [shape = 'u8[16384]{0}', space=vmem, size = 0x4000, scoped, tag = 'input window, operand 0, single buffered']
    #allocation3 [shape = 's32[1]{0}', space=sflag, size = 0x4, scoped, tag = 'scoped memory for tpu_custom_call.1']
    #allocation4 [shape = 's32[1]{0}', space=sflag, size = 0x4, scoped, tag = 'scoped memory for tpu_custom_call.1']
    #allocation5 [shape = 'u8[24576]{0}', space=vmem, size = 0x6000, scoped, tag = 'input window, operand 1, single buffered']
    #allocation6 [shape = 's32[1]{0}', space=sflag, size = 0x4, scoped, tag = 'scoped memory for tpu_custom_call.1']
    #allocation7 [shape = 'u8[16384]{0}', space=vmem, size = 0x4000, scoped, tag = 'output window, operand 0, single buffered']
    %8 = vsyncpa [#allocation3], 0
    %9 = vsyncpa [#allocation6], 0
    %10 = vsyncpa [#allocation4], 0
    // Predicated region
    $region2: #{tpu_custom_call.1} parent=1 // pred_check
      _
    $region3: #{tpu_custom_call.1} parent=1 // pred_check_branch
      %12 = sbr.rel (0) target = $region5
    $region4: #{tpu_custom_call.1} parent=1 // pred_region
      %14 = vsyncadd [#allocation3], 0
      %s15 = sshll.u32 %s0, 4
      %s16 = int_to_ptr.hbm [resolvable:$true] %s15
      %s17 = sshll.u32 [#allocation2], 4
      %s18 = int_to_ptr.vmem [resolvable:$true] %s17
      %23 = dma.hbm_to_vmem [thread:$0]  %s16, 512, %s18, [#allocation3], 128, 128, 8
    $region5: #{tpu_custom_call.1} parent=1 // pred_fallthru
      _
    // Predicated region
    $region6: #{tpu_custom_call.1} parent=1 // pred_check
      _
    $region7: #{tpu_custom_call.1} parent=1 // pred_check_branch
      %25 = sbr.rel (0) target = $region9
    $region8: #{tpu_custom_call.1} parent=1 // pred_region
      %27 = vsyncadd [#allocation6], 0
      %s28 = sshll.u32 %s1, 4
      %s29 = int_to_ptr.hbm [resolvable:$true] %s28
      %s30 = sshll.u32 [#allocation5], 4
      %s31 = int_to_ptr.vmem [resolvable:$true] %s30
      %36 = dma.hbm_to_vmem [thread:$0]  %s29, 768, %s31, [#allocation6], 128, 128, 8
    $region9: #{tpu_custom_call.1} parent=1 // pred_fallthru
      _
    // Predicated region
    $region10: #{tpu_custom_call.1} parent=1 // pred_check
      _
    $region11: #{tpu_custom_call.1} parent=1 // pred_check_branch
      %38 = sbr.rel (0) target = $region13
    $region12: #{tpu_custom_call.1} parent=1 // pred_region
      _
    $region13: #{tpu_custom_call.1} parent=1 // pred_fallthru
      _
    // Predicated region
    $region14: #{tpu_custom_call.1} parent=1 // pred_check
      _
    $region15: #{tpu_custom_call.1} parent=1 // pred_check_branch
      %40 = sbr.rel (0) target = $region17
    $region16: #{tpu_custom_call.1} parent=1 // pred_region
      %42 = dma.done [#allocation3], 512
    $region17: #{tpu_custom_call.1} parent=1 // pred_fallthru
      _
    // Predicated region
    $region18: #{tpu_custom_call.1} parent=1 // pred_check
      _
    $region19: #{tpu_custom_call.1} parent=1 // pred_check_branch
      %44 = sbr.rel (0) target = $region21
    $region20: #{tpu_custom_call.1} parent=1 // pred_region
      %46 = dma.done [#allocation6], 768
    $region21: #{tpu_custom_call.1} parent=1 // pred_fallthru
      _
    %v47 = vld [vmem:[#allocation2] sm:$0xff]
    %v48 = vld [vmem:[#allocation2 + $0x8] sm:$0xff]
    %v49 = vld [vmem:[#allocation2 + $0x10] sm:$0xff]
    %v50 = vld [vmem:[#allocation2 + $0x18] sm:$0xff]
    %v51 = vld [vmem:[#allocation5] sm:$0xff]
    %v52 = vld [vmem:[#allocation5 + $0x8] sm:$0xff]
    %v53 = vld [vmem:[#allocation5 + $0x10] sm:$0xff]
    %v54 = vld [vmem:[#allocation5 + $0x18] sm:$0xff]
    %v55 = vld [vmem:[#allocation5 + $0x20] sm:$0xff]
    %v56 = vld [vmem:[#allocation5 + $0x28] sm:$0xff]
    %v57 = vld [vmem:[%s2] sm:$0x1]
    %v59 = vperm.slane %v57, 0
    %vm61 = vcmask 392192
    %v63 = vsel %vm61, %v47, 0
    %v66 = vsel %vm61, %v48, 0
    %v69 = vsel %vm61, %v49, 0
    %v72 = vsel %vm61, %v50, 0
    %74 = vmatpush.msra.mxu0 0.0
    %75 = vmatpush.msra.mxu0 0.0
    %76 = vmatpush.msra.mxu0 0.0
    %77 = vmatpush.msra.mxu0 0.0
    %78 = vmatpush.msra.mxu0 0.0
    %79 = vmatpush.msra.mxu0 0.0
    %80 = vmatpush.msra.mxu0 0.0
    %81 = vmatpush.msra.mxu0 0.0
    %82 = vmatpush.msra.mxu0 0.0
    %83 = vmatpush.msra.mxu0 0.0
    %84 = vmatpush.msra.mxu0 %v56
    %85 = vmatpush.msra.mxu0 %v55
    %86 = vmatpush.msra.mxu0 %v54
    %87 = vmatpush.msra.mxu0 %v53
    %88 = vmatpush.msra.mxu0 %v52
    %89 = vmatpush.msra.mxu0 %v51
    %90 = vmatmul.f32.gmra.mxu0 %v63
    %v91 = vpop.f32.mrf.mxu0
    %v92 = vadd.f32 %v59, %v91
    %93 = vmatmul.f32.gmra.mxu0 %v66
    %v94 = vpop.f32.mrf.mxu0
    %v95 = vadd.f32 %v59, %v94
    %96 = vmatmul.f32.gmra.mxu0 %v69
    %v97 = vpop.f32.mrf.mxu0
    %v98 = vadd.f32 %v59, %v97
    %99 = vmatmul.f32.gmra.mxu0 %v72
    %v100 = vpop.f32.mrf.mxu0
    %v101 = vadd.f32 %v59, %v100
    %102 = vdwg.mxu0
    %103 = vst [vmem:[#allocation7] sm:$0xff] %v92
    %104 = vst [vmem:[#allocation7 + $0x8] sm:$0xff] %v95
    %105 = vst [vmem:[#allocation7 + $0x10] sm:$0xff] %v98
    %106 = vst [vmem:[#allocation7 + $0x18] sm:$0xff] %v101
    // Predicated region
    $region22: #{tpu_custom_call.1} parent=1 // pred_check
      _
    $region23: #{tpu_custom_call.1} parent=1 // pred_check_branch
      %108 = sbr.rel (0) target = $region25
    $region24: #{tpu_custom_call.1} parent=1 // pred_region
      %110 = vsyncadd [#allocation4], 0
      %s111 = sshll.u32 [#allocation7], 4
      %s112 = int_to_ptr.vmem [resolvable:$true] %s111
      %s113 = sshll.u32 %s3, 4
      %s114 = int_to_ptr.hbm [resolvable:$true] %s113
      %119 = dma.vmem_to_hbm [thread:$0]  %s112, 512, %s114, [#allocation4], 128, 128, 8
    $region25: #{tpu_custom_call.1} parent=1 // pred_fallthru
      _
    // Predicated region
    $region26: #{tpu_custom_call.1} parent=1 // pred_check
      _
    $region27: #{tpu_custom_call.1} parent=1 // pred_check_branch
      %121 = sbr.rel (0) target = $region29
    $region28: #{tpu_custom_call.1} parent=1 // pred_region
      %123 = dma.done [#allocation4], 512
    $region29: #{tpu_custom_call.1} parent=1 // pred_fallthru
      _
    %124 = vsyncpa [#allocation3], 1
    %125 = vsyncpa [#allocation6], 1
    %126 = vsyncpa [#allocation4], 1

</llo_original>
